<compile_context>
chip_gen: v7x
topology: tpu7x:2x2x1
jax: 0.10.0
libtpu: 0.0.40
codegen_flags: <defaults>
</compile_context>

<pallas_src>
import jax
import jax.numpy as jnp
from jax.experimental import pallas as pl
from jax.experimental.pallas import tpu as pltpu

BN_EPS = 1e-5
OUT_DIM = 2
W4_PAD = 128    # lane-padded head width used only inside the kernel (MXU-friendly)
SUBLANE = 8     # x / output are f32 in HBM -> 8-row sublane granularity


def _round_up(n, m):
    return (n + m - 1) // m * m


def _mlp_kernel(x_ref,
                w1_ref, b1_ref,
                w2_ref, b2_ref,
                w3_ref, b3_ref,
                w4_ref, b4_ref,
                o_ref):
    """One batch tile of the fused 4-layer MLP (BN folded, eval-mode dropout)."""
    cdt = w1_ref.dtype                  # compute dtype for MXU inputs (f32 or bf16)
    x = x_ref[...].astype(cdt)          # in-kernel cast: x arrives as f32 from HBM

    # Layer 1: Linear (+ folded BN) -> ReLU
    h = jnp.dot(x, w1_ref[...], preferred_element_type=jnp.float32) + b1_ref[...]
    h = jnp.maximum(h, 0.0)

    # Layer 2: Linear (+ folded BN) -> ReLU
    h = jnp.dot(h.astype(cdt), w2_ref[...],
                preferred_element_type=jnp.float32) + b2_ref[...]
    h = jnp.maximum(h, 0.0)

    # Layer 3: Linear -> ReLU
    h = jnp.dot(h.astype(cdt), w3_ref[...],
                preferred_element_type=jnp.float32) + b3_ref[...]
    h = jnp.maximum(h, 0.0)

    # Layer 4: Linear (w4 padded to 128 lanes for the MXU); store only the
    # 2 real logit columns -> narrow HBM writeback.
    logits = jnp.dot(h.astype(cdt), w4_ref[...],
                     preferred_element_type=jnp.float32) + b4_ref[...]
    o_ref[...] = logits[:, :OUT_DIM]


def improved_predictor_forward(x, folded, *, block_rows=4096,
                               compute_dtype=jnp.float32,
                               vmem_budget_bytes=40 << 20):
    """x: (B, D) float32.  folded: dict from fold_params()."""
    B, D = x.shape
    x = x.astype(jnp.float32)   # HBM input stays f32; kernel casts if needed

    # Per-row VMEM estimate: double-buffered f32 x tile + double-buffered
    # (lane-padded) output block + f32/bf16 intermediates (lane-padded).
    per_row = 2 * D * 4 + 2 * 128 * 4 + 6 * 128 * 4
    tb_cap = max(SUBLANE, (vmem_budget_bytes // per_row) // SUBLANE * SUBLANE)
    tb = min(int(block_rows), tb_cap)
    # Keep >= 2 batch tiles (when B allows) so ("parallel",) can shard the
    # grid across v7x's two TensorCores.
    tb = min(tb, _round_up(pl.cdiv(B, 2), SUBLANE))
    tb = max(SUBLANE, _round_up(tb, SUBLANE))

    B_pad = _round_up(B, tb)
    if B_pad != B:                       # pad only the ragged tail
        x = jnp.pad(x, ((0, B_pad - B), (0, 0)))
    grid = (B_pad // tb,)

    # Weights in compute dtype (tiny, one-time cast); biases stay f32.
    w1 = folded["w1"].astype(compute_dtype)
    w2 = folded["w2"].astype(compute_dtype)
    w3 = folded["w3"].astype(compute_dtype)
    w4 = folded["w4"].astype(compute_dtype)
    b1, b2, b3, b4 = folded["b1"], folded["b2"], folded["b3"], folded["b4"]

    # VMEM limit derived from the actual footprint, capped for v7x (64 MiB).
    weight_bytes = 4 * (D * 128 + 128 * 64 + 64 * 32 + 32 * W4_PAD
                        + 128 + 64 + 32 + W4_PAD)
    footprint = per_row * tb + 2 * weight_bytes
    vmem_limit = int(min(48 << 20, max(footprint + (8 << 20), 16 << 20)))

    const = lambda i: (0, 0)  # parameters: same block every grid step (no re-DMA)

    out = pl.pallas_call(
        _mlp_kernel,
        out_shape=jax.ShapeDtypeStruct((B_pad, OUT_DIM), jnp.float32),
        grid=grid,
        in_specs=[
            pl.BlockSpec((tb, D), lambda i: (i, 0)),   # x tile
            pl.BlockSpec(w1.shape, const), pl.BlockSpec(b1.shape, const),
            pl.BlockSpec(w2.shape, const), pl.BlockSpec(b2.shape, const),
            pl.BlockSpec(w3.shape, const), pl.BlockSpec(b3.shape, const),
            pl.BlockSpec(w4.shape, const), pl.BlockSpec(b4.shape, const),
        ],
        out_specs=pl.BlockSpec((tb, OUT_DIM), lambda i: (i, 0)),
        compiler_params=pltpu.CompilerParams(
            dimension_semantics=("parallel",),   # shard batch tiles across TCs
            vmem_limit_bytes=vmem_limit,
        ),
    )(x, w1, b1, w2, b2, w3, b3, w4, b4)

    return out[:B]


def init_params(key, input_dim):
    """Deterministic synthetic raw parameters matching the PyTorch module.

    Linear weights are stored transposed relative to PyTorch, i.e. shape
    (in_features, out_features), so forward is x @ W + b.
    """
    dims = [(input_dim, 128), (128, 64), (64, 32), (32, OUT_DIM)]
    keys = iter(jax.random.split(key, 16))
    p = {}
    for li, (din, dout) in enumerate(dims, start=1):
        bound = 1.0 / (din ** 0.5)
        p[f"w{li}"] = jax.random.uniform(next(keys), (din, dout), jnp.float32,
                                         -bound, bound)
        p[f"b{li}"] = jax.random.uniform(next(keys), (1, dout), jnp.float32,
                                         -bound, bound)
    for li, dout in ((1, 128), (2, 64)):
        p[f"g{li}"] = 1.0 + 0.1 * jax.random.normal(next(keys), (1, dout), jnp.float32)
        p[f"beta{li}"] = 0.1 * jax.random.normal(next(keys), (1, dout), jnp.float32)
        p[f"mu{li}"] = 0.05 * jax.random.normal(next(keys), (1, dout), jnp.float32)
        p[f"var{li}"] = 1.0 + 0.1 * jax.random.uniform(next(keys), (1, dout), jnp.float32)
    return p


def fold_params(p):
    """Fold eval-mode BatchNorm into the preceding Linear; pad head for the MXU."""
    f = {}
    for li in (1, 2):
        s = p[f"g{li}"] / jnp.sqrt(p[f"var{li}"] + BN_EPS)   # (1, dout)
        t = p[f"beta{li}"] - p[f"mu{li}"] * s
        f[f"w{li}"] = p[f"w{li}"] * s                        # column-wise scale
        f[f"b{li}"] = p[f"b{li}"] * s + t
    f["w3"], f["b3"] = p["w3"], p["b3"]
    # Head kept 128-wide only for the in-kernel matmul; store is narrow.
    f["w4"] = jnp.pad(p["w4"], ((0, 0), (0, W4_PAD - OUT_DIM)))
    f["b4"] = jnp.pad(p["b4"], ((0, 0), (0, W4_PAD - OUT_DIM)))
    return f


def reference_forward(x, p):
    """Pure-JAX reference using the raw (unfolded) parameters, eval semantics."""
    h = x @ p["w1"] + p["b1"]
    h = (h - p["mu1"]) / jnp.sqrt(p["var1"] + BN_EPS) * p["g1"] + p["beta1"]
    h = jnp.maximum(h, 0.0)
    h = h @ p["w2"] + p["b2"]
    h = (h - p["mu2"]) / jnp.sqrt(p["var2"] + BN_EPS) * p["g2"] + p["beta2"]
    h = jnp.maximum(h, 0.0)
    h = jnp.maximum(h @ p["w3"] + p["b3"], 0.0)
    return h @ p["w4"] + p["b4"]


if __name__ == "__main__":
    B, D = 8, 32  # small batch, input_dim=32
    key = jax.random.PRNGKey(0)
    kx, kp = jax.random.split(key)
    x = jax.random.normal(kx, (B, D), jnp.float32)

    raw = init_params(kp, D)
    folded = fold_params(raw)
    ref = reference_forward(x, raw)

    # f32 path (exact vs reference up to BN-fold rounding).
    out = jax.block_until_ready(improved_predictor_forward(x, folded))
    assert out.shape == (B, OUT_DIM)
    assert jnp.allclose(out, ref, atol=1e-4, rtol=1e-4), "f32 mismatch vs reference"

    # bf16 compute path (weights bf16, x cast in-kernel); looser tolerance.
    out_bf16 = jax.block_until_ready(
        improved_predictor_forward(x, folded, compute_dtype=jnp.bfloat16))
    assert out_bf16.shape == (B, OUT_DIM)
    assert jnp.allclose(out_bf16, ref, atol=1e-1, rtol=1e-1), "bf16 mismatch vs reference"

    # Exercise a ragged, multi-tile batch to cover padding + >=2-tile grid path.
    B2 = 37
    x2 = jax.random.normal(kx, (B2, D), jnp.float32)
    ref2 = reference_forward(x2, raw)
    out2 = jax.block_until_ready(improved_predictor_forward(x2, folded))
    assert out2.shape == (B2, OUT_DIM)
    assert jnp.allclose(out2, ref2, atol=1e-4, rtol=1e-4), "ragged-batch mismatch"

    print("KERNEL_OK")
</pallas_src>

<mosaic_0001>
module attributes {stable_mosaic.version = 11 : i64} {
  func.func @_mlp_kernel(%arg0: i32, %arg1: memref<8x32xf32, #tpu.memory_space<vmem>>, %arg2: memref<32x128xf32, #tpu.memory_space<vmem>>, %arg3: memref<1x128xf32, #tpu.memory_space<vmem>>, %arg4: memref<128x64xf32, #tpu.memory_space<vmem>>, %arg5: memref<1x64xf32, #tpu.memory_space<vmem>>, %arg6: memref<64x32xf32, #tpu.memory_space<vmem>>, %arg7: memref<1x32xf32, #tpu.memory_space<vmem>>, %arg8: memref<32x128xf32, #tpu.memory_space<vmem>>, %arg9: memref<1x128xf32, #tpu.memory_space<vmem>>, %arg10: memref<8x2xf32, #tpu.memory_space<vmem>>) attributes {dimension_semantics = [#tpu.dimension_semantics<parallel>], iteration_bounds = array<i64: 1>, scalar_prefetch = 0 : i64, scratch_operands = 0 : i64, tpu.core_type = #tpu.core_type<tc>, window_params = [{transform_indices = @transform_0, window_bounds = array<i64: 8, 32>}, {pipeline_mode = #tpu.pipeline_mode<synchronous>, transform_indices = @transform_1, window_bounds = array<i64: 32, 128>}, {pipeline_mode = #tpu.pipeline_mode<synchronous>, transform_indices = @transform_2, window_bounds = array<i64: 1, 128>}, {pipeline_mode = #tpu.pipeline_mode<synchronous>, transform_indices = @transform_3, window_bounds = array<i64: 128, 64>}, {pipeline_mode = #tpu.pipeline_mode<synchronous>, transform_indices = @transform_4, window_bounds = array<i64: 1, 64>}, {pipeline_mode = #tpu.pipeline_mode<synchronous>, transform_indices = @transform_5, window_bounds = array<i64: 64, 32>}, {pipeline_mode = #tpu.pipeline_mode<synchronous>, transform_indices = @transform_6, window_bounds = array<i64: 1, 32>}, {pipeline_mode = #tpu.pipeline_mode<synchronous>, transform_indices = @transform_7, window_bounds = array<i64: 32, 128>}, {pipeline_mode = #tpu.pipeline_mode<synchronous>, transform_indices = @transform_8, window_bounds = array<i64: 1, 128>}, {transform_indices = @transform_9, window_bounds = array<i64: 8, 2>}]} {
    %c0 = arith.constant 0 : index
    %c0_0 = arith.constant 0 : index
    %0 = vector.load %arg1[%c0, %c0_0] : memref<8x32xf32, #tpu.memory_space<vmem>>, vector<8x32xf32>
    %c0_1 = arith.constant 0 : index
    %c0_2 = arith.constant 0 : index
    %1 = vector.load %arg2[%c0_1, %c0_2] : memref<32x128xf32, #tpu.memory_space<vmem>>, vector<32x128xf32>
    %cst = arith.constant dense<0.000000e+00> : vector<8x128xf32>
    %2 = tpu.matmul %0, %1, %cst {dimension_numbers = #tpu.dot_dimension_numbers<[1], [0], [0], [1], [0, 0, 1, 1], [], []>} : vector<8x32xf32>, vector<32x128xf32>, vector<8x128xf32> -> vector<8x128xf32>
    %c0_3 = arith.constant 0 : index
    %c0_4 = arith.constant 0 : index
    %3 = vector.load %arg3[%c0_3, %c0_4] : memref<1x128xf32, #tpu.memory_space<vmem>>, vector<1x128xf32>
    %4 = vector.broadcast %3 : vector<1x128xf32> to vector<8x128xf32>
    %5 = arith.addf %2, %4 : vector<8x128xf32>
    %cst_5 = arith.constant 0.000000e+00 : f32
    %6 = vector.broadcast %cst_5 : f32 to vector<8x128xf32>
    %7 = arith.maximumf %5, %6 : vector<8x128xf32>
    %c0_6 = arith.constant 0 : index
    %c0_7 = arith.constant 0 : index
    %8 = vector.load %arg4[%c0_6, %c0_7] : memref<128x64xf32, #tpu.memory_space<vmem>>, vector<128x64xf32>
    %cst_8 = arith.constant dense<0.000000e+00> : vector<8x64xf32>
    %9 = tpu.matmul %7, %8, %cst_8 {dimension_numbers = #tpu.dot_dimension_numbers<[1], [0], [0], [1], [0, 0, 1, 1], [], []>} : vector<8x128xf32>, vector<128x64xf32>, vector<8x64xf32> -> vector<8x64xf32>
    %c0_9 = arith.constant 0 : index
    %c0_10 = arith.constant 0 : index
    %10 = vector.load %arg5[%c0_9, %c0_10] : memref<1x64xf32, #tpu.memory_space<vmem>>, vector<1x64xf32>
    %11 = vector.broadcast %10 : vector<1x64xf32> to vector<8x64xf32>
    %12 = arith.addf %9, %11 : vector<8x64xf32>
    %cst_11 = arith.constant 0.000000e+00 : f32
    %13 = vector.broadcast %cst_11 : f32 to vector<8x64xf32>
    %14 = arith.maximumf %12, %13 : vector<8x64xf32>
    %c0_12 = arith.constant 0 : index
    %c0_13 = arith.constant 0 : index
    %15 = vector.load %arg6[%c0_12, %c0_13] : memref<64x32xf32, #tpu.memory_space<vmem>>, vector<64x32xf32>
    %cst_14 = arith.constant dense<0.000000e+00> : vector<8x32xf32>
    %16 = tpu.matmul %14, %15, %cst_14 {dimension_numbers = #tpu.dot_dimension_numbers<[1], [0], [0], [1], [0, 0, 1, 1], [], []>} : vector<8x64xf32>, vector<64x32xf32>, vector<8x32xf32> -> vector<8x32xf32>
    %c0_15 = arith.constant 0 : index
    %c0_16 = arith.constant 0 : index
    %17 = vector.load %arg7[%c0_15, %c0_16] : memref<1x32xf32, #tpu.memory_space<vmem>>, vector<1x32xf32>
    %18 = vector.broadcast %17 : vector<1x32xf32> to vector<8x32xf32>
    %19 = arith.addf %16, %18 : vector<8x32xf32>
    %cst_17 = arith.constant 0.000000e+00 : f32
    %20 = vector.broadcast %cst_17 : f32 to vector<8x32xf32>
    %21 = arith.maximumf %19, %20 : vector<8x32xf32>
    %c0_18 = arith.constant 0 : index
    %c0_19 = arith.constant 0 : index
    %22 = vector.load %arg8[%c0_18, %c0_19] : memref<32x128xf32, #tpu.memory_space<vmem>>, vector<32x128xf32>
    %cst_20 = arith.constant dense<0.000000e+00> : vector<8x128xf32>
    %23 = tpu.matmul %21, %22, %cst_20 {dimension_numbers = #tpu.dot_dimension_numbers<[1], [0], [0], [1], [0, 0, 1, 1], [], []>} : vector<8x32xf32>, vector<32x128xf32>, vector<8x128xf32> -> vector<8x128xf32>
    %c0_21 = arith.constant 0 : index
    %c0_22 = arith.constant 0 : index
    %24 = vector.load %arg9[%c0_21, %c0_22] : memref<1x128xf32, #tpu.memory_space<vmem>>, vector<1x128xf32>
    %25 = vector.broadcast %24 : vector<1x128xf32> to vector<8x128xf32>
    %26 = arith.addf %23, %25 : vector<8x128xf32>
    %27 = vector.extract_strided_slice %26 {offsets = [0, 0], sizes = [8, 2], strides = [1, 1]} : vector<8x128xf32> to vector<8x2xf32>
    %c0_23 = arith.constant 0 : index
    %c0_24 = arith.constant 0 : index
    %28 = vector.load %arg10[%c0_23, %c0_24] : memref<8x2xf32, #tpu.memory_space<vmem>>, vector<8x2xf32>
    tpu.vector_store %arg10[%c0_23, %c0_24], %27 {strides = array<i32>} : memref<8x2xf32, #tpu.memory_space<vmem>>, vector<8x2xf32>,
    return
  }
  func.func @transform_0(%arg0: i32) -> (i32, i32) {
    %c0_i32 = arith.constant 0 : i32
    %c0_i32_0 = arith.constant 0 : i32
    return %arg0, %c0_i32 : i32, i32
  }
  func.func @transform_1(%arg0: i32) -> (i32, i32) {
    %c0_i32 = arith.constant 0 : i32
    %c0_i32_0 = arith.constant 0 : i32
    %c0_i32_1 = arith.constant 0 : i32
    return %c0_i32, %c0_i32_0 : i32, i32
  }
  func.func @transform_2(%arg0: i32) -> (i32, i32) {
    %c0_i32 = arith.constant 0 : i32
    %c0_i32_0 = arith.constant 0 : i32
    %c0_i32_1 = arith.constant 0 : i32
    return %c0_i32, %c0_i32_0 : i32, i32
  }
  func.func @transform_3(%arg0: i32) -> (i32, i32) {
    %c0_i32 = arith.constant 0 : i32
    %c0_i32_0 = arith.constant 0 : i32
    %c0_i32_1 = arith.constant 0 : i32
    return %c0_i32, %c0_i32_0 : i32, i32
  }
  func.func @transform_4(%arg0: i32) -> (i32, i32) {
    %c0_i32 = arith.constant 0 : i32
    %c0_i32_0 = arith.constant 0 : i32
    %c0_i32_1 = arith.constant 0 : i32
    return %c0_i32, %c0_i32_0 : i32, i32
  }
  func.func @transform_5(%arg0: i32) -> (i32, i32) {
    %c0_i32 = arith.constant 0 : i32
    %c0_i32_0 = arith.constant 0 : i32
    %c0_i32_1 = arith.constant 0 : i32
    return %c0_i32, %c0_i32_0 : i32, i32
  }
  func.func @transform_6(%arg0: i32) -> (i32, i32) {
    %c0_i32 = arith.constant 0 : i32
    %c0_i32_0 = arith.constant 0 : i32
    %c0_i32_1 = arith.constant 0 : i32
    return %c0_i32, %c0_i32_0 : i32, i32
  }
  func.func @transform_7(%arg0: i32) -> (i32, i32) {
    %c0_i32 = arith.constant 0 : i32
    %c0_i32_0 = arith.constant 0 : i32
    %c0_i32_1 = arith.constant 0 : i32
    return %c0_i32, %c0_i32_0 : i32, i32
  }
  func.func @transform_8(%arg0: i32) -> (i32, i32) {
    %c0_i32 = arith.constant 0 : i32
    %c0_i32_0 = arith.constant 0 : i32
    %c0_i32_1 = arith.constant 0 : i32
    return %c0_i32, %c0_i32_0 : i32, i32
  }
  func.func @transform_9(%arg0: i32) -> (i32, i32) {
    %c0_i32 = arith.constant 0 : i32
    %c0_i32_0 = arith.constant 0 : i32
    return %arg0, %c0_i32 : i32, i32
  }
}

</mosaic_0001>

<llo_original>
// kernel: tpu_custom_call.1
$region0: #{tpu_custom_call.1}
  #allocation0 [shape = 'u32[]', space=smem, size = 0x4, offset = 0x4, fixed_abs, tag = 'smem constant byte address 0x4 - core index']
  #allocation1 [shape = 'u32[144,128]{1,0:T(1,128)}', space=vmem, size = 0x12000, scoped, tag = 'internal scratch']
  %s0 = inlined_call_operand.vmem [shape: f32[8,32], index: 0, kind: input, shape index: {}]
  %s1 = inlined_call_operand.vmem [shape: f32[32,128], index: 1, kind: input, shape index: {}]
  %s2 = inlined_call_operand.vmem [shape: f32[1,128], index: 2, kind: input, shape index: {}]
  %s3 = inlined_call_operand.vmem [shape: f32[128,64], index: 3, kind: input, shape index: {}]
  %s4 = inlined_call_operand.vmem [shape: f32[1,64], index: 4, kind: input, shape index: {}]
  %s5 = inlined_call_operand.vmem [shape: f32[64,32], index: 5, kind: input, shape index: {}]
  %s6 = inlined_call_operand.vmem [shape: f32[1,32], index: 6, kind: input, shape index: {}]
  %s7 = inlined_call_operand.vmem [shape: f32[32,128], index: 7, kind: input, shape index: {}]
  %s8 = inlined_call_operand.vmem [shape: f32[1,128], index: 8, kind: input, shape index: {}]
  %s9 = inlined_call_operand.vmem [shape: f32[8,2], index: 9, kind: output, shape index: {}]
  %s10 = sld [smem:[#allocation0]]
  $region46: #{tpu_custom_call.1} parent=0
    _
  %s12 = ssub.s32 1, %s10
  %s13 = scalar_select 0, %s12, %s10
  // Predicated region
  $region2: #{tpu_custom_call.1} parent=0 // pred_check
    _
  $region3: #{tpu_custom_call.1} parent=0 // pred_check_branch
    %15 = sbr.rel (0) target = $region5
  $region4: #{tpu_custom_call.1} parent=0 // pred_region
    _
  $region5: #{tpu_custom_call.1} parent=0 // pred_fallthru
    _
  // Predicated region
  $region6: #{tpu_custom_call.1} parent=0 // pred_check
    _
  $region7: #{tpu_custom_call.1} parent=0 // pred_check_branch
    %17 = sbr.rel (0) target = $region9
  $region8: #{tpu_custom_call.1} parent=0 // pred_region
    _
  $region9: #{tpu_custom_call.1} parent=0 // pred_fallthru
    _
  // Predicated region
  $region10: #{tpu_custom_call.1} parent=0 // pred_check
    _
  $region11: #{tpu_custom_call.1} parent=0 // pred_check_branch
    %19 = sbr.rel (0) target = $region13
  $region12: #{tpu_custom_call.1} parent=0 // pred_region
    _
  $region13: #{tpu_custom_call.1} parent=0 // pred_fallthru
    _
  // Predicated region
  $region14: #{tpu_custom_call.1} parent=0 // pred_check
    _
  $region15: #{tpu_custom_call.1} parent=0 // pred_check_branch
    %21 = sbr.rel (0) target = $region17
  $region16: #{tpu_custom_call.1} parent=0 // pred_region
    _
  $region17: #{tpu_custom_call.1} parent=0 // pred_fallthru
    _
  // Predicated region
  $region18: #{tpu_custom_call.1} parent=0 // pred_check
    _
  $region19: #{tpu_custom_call.1} parent=0 // pred_check_branch
    %23 = sbr.rel (0) target = $region21
  $region20: #{tpu_custom_call.1} parent=0 // pred_region
    _
  $region21: #{tpu_custom_call.1} parent=0 // pred_fallthru
    _
  // Predicated region
  $region22: #{tpu_custom_call.1} parent=0 // pred_check
    _
  $region23: #{tpu_custom_call.1} parent=0 // pred_check_branch
    %25 = sbr.rel (0) target = $region25
  $region24: #{tpu_custom_call.1} parent=0 // pred_region
    _
  $region25: #{tpu_custom_call.1} parent=0 // pred_fallthru
    _
  // Predicated region
  $region26: #{tpu_custom_call.1} parent=0 // pred_check
    _
  $region27: #{tpu_custom_call.1} parent=0 // pred_check_branch
    %27 = sbr.rel (0) target = $region29
  $region28: #{tpu_custom_call.1} parent=0 // pred_region
    _
  $region29: #{tpu_custom_call.1} parent=0 // pred_fallthru
    _
  // Predicated region
  $region30: #{tpu_custom_call.1} parent=0 // pred_check
    _
  $region31: #{tpu_custom_call.1} parent=0 // pred_check_branch
    %29 = sbr.rel (0) target = $region33
  $region32: #{tpu_custom_call.1} parent=0 // pred_region
    _
  $region33: #{tpu_custom_call.1} parent=0 // pred_fallthru
    _
  // Predicated region
  $region34: #{tpu_custom_call.1} parent=0 // pred_check
    _
  $region35: #{tpu_custom_call.1} parent=0 // pred_check_branch
    %31 = sbr.rel (0) target = $region37
  $region36: #{tpu_custom_call.1} parent=0 // pred_region
    _
  $region37: #{tpu_custom_call.1} parent=0 // pred_fallthru
    _
  %v32 = vld [vmem:[%s0] sm:$0xff]
  %v33 = vld [vmem:[%s1] sm:$0xff]
  %v34 = vld [vmem:[%s1 + $0x8] sm:$0xff]
  %v35 = vld [vmem:[%s1 + $0x10] sm:$0xff]
  %v36 = vld [vmem:[%s1 + $0x18] sm:$0xff]
  %v37 = vld [vmem:[%s2] sm:$0x1]
  %v39 = vlaneseq
  %v40 = vshrl.u32 %v39, 7
  %v41 = vsub.s32 0, %v40
  %v42 = vrot.slane %v37, %v41
  %vm44 = vcmask 261120
  %v46 = vsel %vm44, %v32, 0
  %48 = vmatprep.subr.mxu0 0.0
  %49 = vmatpush1.msra.mxu0 %v33
  %50 = vmatprep.subr.mxu0 0.0
  %51 = vmatpush1.msra.mxu0 %v34
  %52 = vmatprep.subr.mxu0 0.0
  %53 = vmatpush1.msra.mxu0 %v35
  %54 = vmatprep.subr.mxu0 0.0
  %55 = vmatpush1.msra.mxu0 %v36
  %56 = vmatprep.subr.mxu0 0.0
  %57 = vmatpush1.msra.mxu0 0.0
  %58 = vmatprep.subr.mxu0 0.0
  %59 = vmatpush1.msra.mxu0 0.0
  %60 = vmatprep.subr.mxu0 0.0
  %61 = vmatpush1.msra.mxu0 0.0
  %62 = vmatprep.subr.mxu0 0.0
  %63 = vmatpush1.msra.mxu0 0.0
  %64 = vmatprep.subr.mxu0 0.0
  %65 = vmatpush1.msra.mxu0 0.0
  %66 = vmatprep.subr.mxu0 0.0
  %67 = vmatpush1.msra.mxu0 0.0
  %68 = vmatprep.subr.mxu0 0.0
  %69 = vmatpush1.msra.mxu0 0.0
  %70 = vmatprep.subr.mxu0 0.0
  %71 = vmatpush1.msra.mxu0 0.0
  %72 = vmatprep.subr.mxu0 0.0
  %73 = vmatpush1.msra.mxu0 0.0
  %74 = vmatprep.subr.mxu0 0.0
  %75 = vmatpush1.msra.mxu0 0.0
  %76 = vmatprep.subr.mxu0 0.0
  %77 = vmatpush1.msra.mxu0 0.0
  %78 = vmatprep.subr.mxu0 0.0
  %79 = vmatpush1.msra.mxu0 0.0
  %80 = vmatprep.subr.mxu0 0.0
  %81 = vmatpush1.msra.mxu0 0.0
  %82 = vmatprep.subr.mxu0 0.0
  %83 = vmatpush1.msra.mxu0 0.0
  %84 = vmatprep.subr.mxu0 0.0
  %85 = vmatpush1.msra.mxu0 0.0
  %86 = vmatprep.subr.mxu0 0.0
  %87 = vmatpush1.msra.mxu0 0.0
  %88 = vmatprep.subr.mxu0 0.0
  %89 = vmatpush1.msra.mxu0 0.0
  %90 = vmatprep.subr.mxu0 0.0
  %91 = vmatpush1.msra.mxu0 0.0
  %92 = vmatprep.subr.mxu0 0.0
  %93 = vmatpush1.msra.mxu0 0.0
  %94 = vmatprep.subr.mxu0 0.0
  %95 = vmatpush1.msra.mxu0 0.0
  %96 = vmatprep.subr.mxu0 0.0
  %97 = vmatpush1.msra.mxu0 0.0
  %98 = vmatprep.subr.mxu0 0.0
  %99 = vmatpush1.msra.mxu0 0.0
  %100 = vmatprep.subr.mxu0 0.0
  %101 = vmatpush1.msra.mxu0 0.0
  %102 = vmatprep.subr.mxu0 0.0
  %103 = vmatpush1.msra.mxu0 0.0
  %104 = vmatprep.subr.mxu0 0.0
  %105 = vmatpush1.msra.mxu0 0.0
  %106 = vmatprep.subr.mxu0 0.0
  %107 = vmatpush1.msra.mxu0 0.0
  %108 = vmatprep.subr.mxu0 0.0
  %109 = vmatpush1.msra.mxu0 0.0
  %110 = vmatprep.subr.mxu0 0.0
  %111 = vmatpush1.msra.mxu0 0.0
  %112 = vmatprep.mubr.f32.mxu0 0.0
  %113 = vmatmul.mubr.f32.gmra.mrb[0].mxu0 %v46
  %v114 = vpop.f32.mrb[0].mxu0
  %v115 = vadd.f32 %v42, %v114
  %v116 = vpop.f32.mrb[0].mxu0
  %117 = vdwg.mxu0
  %v118 = vmax.f32 %v115, 0.0
  %v119 = vld [vmem:[%s3] sm:$0xff]
  %v120 = vld [vmem:[%s3 + $0x8] sm:$0xff]
  %v121 = vld [vmem:[%s3 + $0x10] sm:$0xff]
  %v122 = vld [vmem:[%s3 + $0x18] sm:$0xff]
  %v123 = vld [vmem:[%s3 + $0x20] sm:$0xff]
  %v124 = vld [vmem:[%s3 + $0x28] sm:$0xff]
  %v125 = vld [vmem:[%s3 + $0x30] sm:$0xff]
  %v126 = vld [vmem:[%s3 + $0x38] sm:$0xff]
  %v127 = vld [vmem:[%s3 + $0x40] sm:$0xff]
  %v128 = vld [vmem:[%s3 + $0x48] sm:$0xff]
  %v129 = vld [vmem:[%s3 + $0x50] sm:$0xff]
  %v130 = vld [vmem:[%s3 + $0x58] sm:$0xff]
  %v131 = vld [vmem:[%s3 + $0x60] sm:$0xff]
  %v132 = vld [vmem:[%s3 + $0x68] sm:$0xff]
  %v133 = vld [vmem:[%s3 + $0x70] sm:$0xff]
  %v134 = vld [vmem:[%s3 + $0x78] sm:$0xff]
  %v135 = vld [vmem:[%s4] sm:$0x1]
  %v137 = vlaneseq
  %v138 = vshrl.u32 %v137, 7
  %v139 = vsub.s32 0, %v138
  %v140 = vrot.slane %v135, %v139
  %142 = vmatprep.subr.mxu0 0.0
  %143 = vmatpush1.msra.mxu0 %v119
  %144 = vmatprep.subr.mxu0 0.0
  %145 = vmatpush1.msra.mxu0 %v120
  %146 = vmatprep.subr.mxu0 0.0
  %147 = vmatpush1.msra.mxu0 %v121
  %148 = vmatprep.subr.mxu0 0.0
  %149 = vmatpush1.msra.mxu0 %v122
  %150 = vmatprep.subr.mxu0 0.0
  %151 = vmatpush1.msra.mxu0 %v123
  %152 = vmatprep.subr.mxu0 0.0
  %153 = vmatpush1.msra.mxu0 %v124
  %154 = vmatprep.subr.mxu0 0.0
  %155 = vmatpush1.msra.mxu0 %v125
  %156 = vmatprep.subr.mxu0 0.0
  %157 = vmatpush1.msra.mxu0 %v126
  %158 = vmatprep.subr.mxu0 0.0
  %159 = vmatpush1.msra.mxu0 %v127
  %160 = vmatprep.subr.mxu0 0.0
  %161 = vmatpush1.msra.mxu0 %v128
  %162 = vmatprep.subr.mxu0 0.0
  %163 = vmatpush1.msra.mxu0 %v129
  %164 = vmatprep.subr.mxu0 0.0
  %165 = vmatpush1.msra.mxu0 %v130
  %166 = vmatprep.subr.mxu0 0.0
  %167 = vmatpush1.msra.mxu0 %v131
  %168 = vmatprep.subr.mxu0 0.0
  %169 = vmatpush1.msra.mxu0 %v132
  %170 = vmatprep.subr.mxu0 0.0
  %171 = vmatpush1.msra.mxu0 %v133
  %172 = vmatprep.subr.mxu0 0.0
  %173 = vmatpush1.msra.mxu0 %v134
  %174 = vmatprep.subr.mxu0 0.0
  %175 = vmatpush1.msra.mxu0 0.0
  %176 = vmatprep.subr.mxu0 0.0
  %177 = vmatpush1.msra.mxu0 0.0
  %178 = vmatprep.subr.mxu0 0.0
  %179 = vmatpush1.msra.mxu0 0.0
  %180 = vmatprep.subr.mxu0 0.0
  %181 = vmatpush1.msra.mxu0 0.0
  %182 = vmatprep.subr.mxu0 0.0
  %183 = vmatpush1.msra.mxu0 0.0
  %184 = vmatprep.subr.mxu0 0.0
  %185 = vmatpush1.msra.mxu0 0.0
  %186 = vmatprep.subr.mxu0 0.0
  %187 = vmatpush1.msra.mxu0 0.0
  %188 = vmatprep.subr.mxu0 0.0
  %189 = vmatpush1.msra.mxu0 0.0
  %190 = vmatprep.subr.mxu0 0.0
  %191 = vmatpush1.msra.mxu0 0.0
  %192 = vmatprep.subr.mxu0 0.0
  %193 = vmatpush1.msra.mxu0 0.0
  %194 = vmatprep.subr.mxu0 0.0
  %195 = vmatpush1.msra.mxu0 0.0
  %196 = vmatprep.subr.mxu0 0.0
  %197 = vmatpush1.msra.mxu0 0.0
  %198 = vmatprep.subr.mxu0 0.0
  %199 = vmatpush1.msra.mxu0 0.0
  %200 = vmatprep.subr.mxu0 0.0
  %201 = vmatpush1.msra.mxu0 0.0
  %202 = vmatprep.subr.mxu0 0.0
  %203 = vmatpush1.msra.mxu0 0.0
  %204 = vmatprep.subr.mxu0 0.0
  %205 = vmatpush1.msra.mxu0 0.0
  %206 = vmatprep.mubr.f32.mxu0 0.0
  %207 = vmatmul.mubr.f32.gmra.mrb[0].mxu0 %v118
  %v208 = vpop.f32.mrb[0].mxu0
  %v209 = vadd.f32 %v140, %v208
  %v210 = vpop.f32.mrb[0].mxu0
  %211 = vdwg.mxu0
  %v212 = vmax.f32 %v209, 0.0
  %v213 = vld [vmem:[%s5] sm:$0xff]
  %v214 = vld [vmem:[%s5 + $0x8] sm:$0xff]
  %v215 = vld [vmem:[%s5 + $0x10] sm:$0xff]
  %v216 = vld [vmem:[%s5 + $0x18] sm:$0xff]
  %v217 = vld [vmem:[%s5 + $0x20] sm:$0xff]
  %v218 = vld [vmem:[%s5 + $0x28] sm:$0xff]
  %v219 = vld [vmem:[%s5 + $0x30] sm:$0xff]
  %v220 = vld [vmem:[%s5 + $0x38] sm:$0xff]
  %v221 = vld [vmem:[%s6] sm:$0x1]
  %v223 = vlaneseq
  %v224 = vshrl.u32 %v223, 7
  %v225 = vsub.s32 0, %v224
  %v226 = vrot.slane %v221, %v225
  %vm228 = vcmask 523264
  %v230 = vsel %vm228, %v212, 0
  %232 = vmatprep.subr.mxu0 0.0
  %233 = vmatpush1.msra.mxu0 %v213
  %234 = vmatprep.subr.mxu0 0.0
  %235 = vmatpush1.msra.mxu0 %v214
  %236 = vmatprep.subr.mxu0 0.0
  %237 = vmatpush1.msra.mxu0 %v215
  %238 = vmatprep.subr.mxu0 0.0
  %239 = vmatpush1.msra.mxu0 %v216
  %240 = vmatprep.subr.mxu0 0.0
  %241 = vmatpush1.msra.mxu0 %v217
  %242 = vmatprep.subr.mxu0 0.0
  %243 = vmatpush1.msra.mxu0 %v218
  %244 = vmatprep.subr.mxu0 0.0
  %245 = vmatpush1.msra.mxu0 %v219
  %246 = vmatprep.subr.mxu0 0.0
  %247 = vmatpush1.msra.mxu0 %v220
  %248 = vmatprep.subr.mxu0 0.0
  %249 = vmatpush1.msra.mxu0 0.0
  %250 = vmatprep.subr.mxu0 0.0
  %251 = vmatpush1.msra.mxu0 0.0
  %252 = vmatprep.subr.mxu0 0.0
  %253 = vmatpush1.msra.mxu0 0.0
  %254 = vmatprep.subr.mxu0 0.0
  %255 = vmatpush1.msra.mxu0 0.0
  %256 = vmatprep.subr.mxu0 0.0
  %257 = vmatpush1.msra.mxu0 0.0
  %258 = vmatprep.subr.mxu0 0.0
  %259 = vmatpush1.msra.mxu0 0.0
  %260 = vmatprep.subr.mxu0 0.0
  %261 = vmatpush1.msra.mxu0 0.0
  %262 = vmatprep.subr.mxu0 0.0
  %263 = vmatpush1.msra.mxu0 0.0
  %264 = vmatprep.subr.mxu0 0.0
  %265 = vmatpush1.msra.mxu0 0.0
  %266 = vmatprep.subr.mxu0 0.0
  %267 = vmatpush1.msra.mxu0 0.0
  %268 = vmatprep.subr.mxu0 0.0
  %269 = vmatpush1.msra.mxu0 0.0
  %270 = vmatprep.subr.mxu0 0.0
  %271 = vmatpush1.msra.mxu0 0.0
  %272 = vmatprep.subr.mxu0 0.0
  %273 = vmatpush1.msra.mxu0 0.0
  %274 = vmatprep.subr.mxu0 0.0
  %275 = vmatpush1.msra.mxu0 0.0
  %276 = vmatprep.subr.mxu0 0.0
  %277 = vmatpush1.msra.mxu0 0.0
  %278 = vmatprep.subr.mxu0 0.0
  %279 = vmatpush1.msra.mxu0 0.0
  %280 = vmatprep.subr.mxu0 0.0
  %281 = vmatpush1.msra.mxu0 0.0
  %282 = vmatprep.subr.mxu0 0.0
  %283 = vmatpush1.msra.mxu0 0.0
  %284 = vmatprep.subr.mxu0 0.0
  %285 = vmatpush1.msra.mxu0 0.0
  %286 = vmatprep.subr.mxu0 0.0
  %287 = vmatpush1.msra.mxu0 0.0
  %288 = vmatprep.subr.mxu0 0.0
  %289 = vmatpush1.msra.mxu0 0.0
  %290 = vmatprep.subr.mxu0 0.0
  %291 = vmatpush1.msra.mxu0 0.0
  %292 = vmatprep.subr.mxu0 0.0
  %293 = vmatpush1.msra.mxu0 0.0
  %294 = vmatprep.subr.mxu0 0.0
  %295 = vmatpush1.msra.mxu0 0.0
  %296 = vmatprep.mubr.f32.mxu0 0.0
  %297 = vmatmul.mubr.f32.gmra.mrb[0].mxu0 %v230
  %v298 = vpop.f32.mrb[0].mxu0
  %v299 = vadd.f32 %v226, %v298
  %v300 = vpop.f32.mrb[0].mxu0
  %301 = vdwg.mxu0
  %v302 = vmax.f32 %v299, 0.0
  %v303 = vld [vmem:[%s7] sm:$0xff]
  %v304 = vld [vmem:[%s7 + $0x8] sm:$0xff]
  %v305 = vld [vmem:[%s7 + $0x10] sm:$0xff]
  %v306 = vld [vmem:[%s7 + $0x18] sm:$0xff]
  %v307 = vld [vmem:[%s8] sm:$0x1]
  %v309 = vlaneseq
  %v310 = vshrl.u32 %v309, 7
  %v311 = vsub.s32 0, %v310
  %v312 = vrot.slane %v307, %v311
  %v315 = vsel %vm44, %v302, 0
  %317 = vmatprep.subr.mxu0 0.0
  %318 = vmatpush1.msra.mxu0 %v303
  %319 = vmatprep.subr.mxu0 0.0
  %320 = vmatpush1.msra.mxu0 %v304
  %321 = vmatprep.subr.mxu0 0.0
  %322 = vmatpush1.msra.mxu0 %v305
  %323 = vmatprep.subr.mxu0 0.0
  %324 = vmatpush1.msra.mxu0 %v306
  %325 = vmatprep.subr.mxu0 0.0
  %326 = vmatpush1.msra.mxu0 0.0
  %327 = vmatprep.subr.mxu0 0.0
  %328 = vmatpush1.msra.mxu0 0.0
  %329 = vmatprep.subr.mxu0 0.0
  %330 = vmatpush1.msra.mxu0 0.0
  %331 = vmatprep.subr.mxu0 0.0
  %332 = vmatpush1.msra.mxu0 0.0
  %333 = vmatprep.subr.mxu0 0.0
  %334 = vmatpush1.msra.mxu0 0.0
  %335 = vmatprep.subr.mxu0 0.0
  %336 = vmatpush1.msra.mxu0 0.0
  %337 = vmatprep.subr.mxu0 0.0
  %338 = vmatpush1.msra.mxu0 0.0
  %339 = vmatprep.subr.mxu0 0.0
  %340 = vmatpush1.msra.mxu0 0.0
  %341 = vmatprep.subr.mxu0 0.0
  %342 = vmatpush1.msra.mxu0 0.0
  %343 = vmatprep.subr.mxu0 0.0
  %344 = vmatpush1.msra.mxu0 0.0
  %345 = vmatprep.subr.mxu0 0.0
  %346 = vmatpush1.msra.mxu0 0.0
  %347 = vmatprep.subr.mxu0 0.0
  %348 = vmatpush1.msra.mxu0 0.0
  %349 = vmatprep.subr.mxu0 0.0
  %350 = vmatpush1.msra.mxu0 0.0
  %351 = vmatprep.subr.mxu0 0.0
  %352 = vmatpush1.msra.mxu0 0.0
  %353 = vmatprep.subr.mxu0 0.0
  %354 = vmatpush1.msra.mxu0 0.0
  %355 = vmatprep.subr.mxu0 0.0
  %356 = vmatpush1.msra.mxu0 0.0
  %357 = vmatprep.subr.mxu0 0.0
  %358 = vmatpush1.msra.mxu0 0.0
  %359 = vmatprep.subr.mxu0 0.0
  %360 = vmatpush1.msra.mxu0 0.0
  %361 = vmatprep.subr.mxu0 0.0
  %362 = vmatpush1.msra.mxu0 0.0
  %363 = vmatprep.subr.mxu0 0.0
  %364 = vmatpush1.msra.mxu0 0.0
  %365 = vmatprep.subr.mxu0 0.0
  %366 = vmatpush1.msra.mxu0 0.0
  %367 = vmatprep.subr.mxu0 0.0
  %368 = vmatpush1.msra.mxu0 0.0
  %369 = vmatprep.subr.mxu0 0.0
  %370 = vmatpush1.msra.mxu0 0.0
  %371 = vmatprep.subr.mxu0 0.0
  %372 = vmatpush1.msra.mxu0 0.0
  %373 = vmatprep.subr.mxu0 0.0
  %374 = vmatpush1.msra.mxu0 0.0
  %375 = vmatprep.subr.mxu0 0.0
  %376 = vmatpush1.msra.mxu0 0.0
  %377 = vmatprep.subr.mxu0 0.0
  %378 = vmatpush1.msra.mxu0 0.0
  %379 = vmatprep.subr.mxu0 0.0
  %380 = vmatpush1.msra.mxu0 0.0
  %381 = vmatprep.mubr.f32.mxu0 0.0
  %382 = vmatmul.mubr.f32.gmra.mrb[0].mxu0 %v315
  %v383 = vpop.f32.mrb[0].mxu0
  %v384 = vadd.f32 %v312, %v383
  %v385 = vpop.f32.mrb[0].mxu0
  %386 = vdwg.mxu0
  %vm387 = vcmask 15360
  %388 = vst.msk [vmem:[%s9] sm:$0xff] %vm387, %v384
  // Predicated region
  $region38: #{tpu_custom_call.1} parent=0 // pred_check
    _
  $region39: #{tpu_custom_call.1} parent=0 // pred_check_branch
    %390 = sbr.rel (0) target = $region41
  $region40: #{tpu_custom_call.1} parent=0 // pred_region
    _
  $region41: #{tpu_custom_call.1} parent=0 // pred_fallthru
    _
  // Predicated region
  $region42: #{tpu_custom_call.1} parent=0 // pred_check
    _
  $region43: #{tpu_custom_call.1} parent=0 // pred_check_branch
    %392 = sbr.rel (0) target = $region45
  $region44: #{tpu_custom_call.1} parent=0 // pred_region
    _
  $region45: #{tpu_custom_call.1} parent=0 // pred_fallthru
    _

</llo_original>
